<compile_context>
chip_gen: v7x
topology: tpu7x:2x2x1
jax: 0.10.0
libtpu: 0.0.40
codegen_flags: <defaults>
</compile_context>

<pallas_src>
import jax
import jax.numpy as jnp
from jax import lax
from jax.experimental import pallas as pl
from jax.experimental.pallas import tpu as pltpu


def _pool_selectors(l_conv, l_pool):
    """0/1 matrices extracting even / odd conv columns, shape (L_conv, L_pool)."""
    rows = jnp.arange(l_conv, dtype=jnp.int32)[:, None]
    cols = jnp.arange(l_pool, dtype=jnp.int32)[None, :]
    even = (rows == 2 * cols).astype(jnp.float32)
    odd = (rows == 2 * cols + 1).astype(jnp.float32)
    return even, odd


def _make_encoder_kernel(layer_dims, k_size, batch):
    """Builds the fused encoder kernel.

    Ref order: x, then per layer (w_flat, bias, sel_even, sel_odd), then the
    output, then one im2col VMEM scratch per layer.
    """
    n_layers = len(layer_dims)

    def kernel(*refs):
        x_ref = refs[0]
        layer_refs = [refs[1 + 4 * li: 1 + 4 * (li + 1)] for li in range(n_layers)]
        o_ref = refs[1 + 4 * n_layers]
        xcol_refs = refs[2 + 4 * n_layers:]

        # Hoist all (batch-invariant) parameter / selector loads out of the loop.
        layer_vals = [(w_ref[...], b_ref[...], se_ref[...], so_ref[...])
                      for (w_ref, b_ref, se_ref, so_ref) in layer_refs]

        for i in range(batch):                       # tiny static batch, fully unrolled
            act = x_ref[i]                           # (C_in, L_in)
            for li, (c_in, _c_out, _l_in, l_conv, _l_pool) in enumerate(layer_dims):
                w, b, sel_even, sel_odd = layer_vals[li]
                xcol = xcol_refs[li]                 # (K*C_in, L_conv) VMEM scratch
                # im2col: tap k occupies sublane rows [k*C_in, (k+1)*C_in).
                for k in range(k_size):
                    xcol[k * c_in:(k + 1) * c_in, :] = act[:, k:k + l_conv]
                # Conv1d (+bias) as ONE MXU matmul, then ReLU.
                h = jnp.dot(w, xcol[...], preferred_element_type=jnp.float32) + b
                h = jnp.maximum(h, 0.0)
                # MaxPool1d(2,2), floor mode: gather even/odd columns with the
                # hoisted 0/1 selector matmuls, then elementwise max (the last
                # conv column is dropped when L_conv is odd, matching PyTorch).
                act = jnp.maximum(
                    jnp.dot(h, sel_even, preferred_element_type=jnp.float32),
                    jnp.dot(h, sel_odd, preferred_element_type=jnp.float32))
            o_ref[i] = act                           # (C_last, L_pool_last)

    return kernel


def encoder_forward(x, params, *, k_size=5):
    """ENCODER.forward: stacked (conv -> relu -> maxpool) blocks, then Flatten.

    x: (N, C_in, L_in) f32; params: list of (w (C_out, C_in, K), b (C_out,)).
    Returns (N, C_last * L_last) f32.
    """
    n, c_in, l_in = x.shape
    layer_dims = []
    inputs = [x.astype(jnp.float32)]
    scratch = []
    cur_c, cur_l = c_in, l_in
    for w, b in params:
        c_out = w.shape[0]
        l_conv = cur_l - k_size + 1                  # valid conv, stride 1
        l_pool = (l_conv - 2) // 2 + 1               # MaxPool1d(2, 2), floor mode
        layer_dims.append((cur_c, c_out, cur_l, l_conv, l_pool))
        # (C_out, C_in, K) -> (C_out, K*C_in): matches im2col row order k*C_in + c.
        w_flat = jnp.transpose(w, (0, 2, 1)).reshape(c_out, k_size * cur_c)
        sel_even, sel_odd = _pool_selectors(l_conv, l_pool)
        inputs += [w_flat.astype(jnp.float32),
                   b.reshape(c_out, 1).astype(jnp.float32),
                   sel_even, sel_odd]
        scratch.append(pltpu.VMEM((k_size * cur_c, l_conv), jnp.float32))
        cur_c, cur_l = c_out, l_pool

    kernel = _make_encoder_kernel(tuple(layer_dims), k_size, n)
    out = pl.pallas_call(
        kernel,
        out_shape=jax.ShapeDtypeStruct((n, cur_c, cur_l), jnp.float32),
        scratch_shapes=scratch,
    )(*inputs)
    return out.reshape(n, -1)                        # Flatten: free bitcast under jit


def init_encoder_params(key, filter_sizes, in_ch=2, k_size=5):
    """Deterministic init matching nn.Conv1d shapes: w (C_out, C_in, K), b (C_out,)."""
    params = []
    for dim in filter_sizes:
        key, kw, kb = jax.random.split(key, 3)
        fan_in = in_ch * k_size
        bound = 1.0 / (fan_in ** 0.5)
        w = jax.random.uniform(kw, (dim, in_ch, k_size), jnp.float32, -bound, bound)
        b = jax.random.uniform(kb, (dim,), jnp.float32, -bound, bound)
        params.append((w, b))
        in_ch = dim
    return params


def encoder_reference(x, params):
    """Pure-JAX reference (mirrors the PyTorch forward) for a correctness check."""
    for w, b in params:
        y = lax.conv_general_dilated(
            x, w, window_strides=(1,), padding='VALID',
            dimension_numbers=('NCH', 'OIH', 'NCH'))
        y = y + b[None, :, None]
        y = jnp.maximum(y, 0.0)
        y = lax.reduce_window(y, -jnp.inf, lax.max,
                              window_dimensions=(1, 1, 2),
                              window_strides=(1, 1, 2),
                              padding='VALID')
        x = y
    return x.reshape(x.shape[0], -1)


if __name__ == "__main__":
    key = jax.random.PRNGKey(0)
    k_x, k_p = jax.random.split(key)

    # ENCODER(filter_sizes=[8, 16], in_length=75, in_ch=2), batch = 2
    batch, in_ch, in_length = 2, 2, 75
    filter_sizes = [8, 16]

    x = jax.random.normal(k_x, (batch, in_ch, in_length), dtype=jnp.float32)
    params = init_encoder_params(k_p, filter_sizes, in_ch=in_ch, k_size=5)

    fwd = jax.jit(encoder_forward)
    out = jax.block_until_ready(fwd(x, params))

    ref = jax.block_until_ready(encoder_reference(x, params))
    assert out.shape == ref.shape, (out.shape, ref.shape)
    assert jnp.allclose(out, ref, atol=1e-4, rtol=1e-4), float(jnp.abs(out - ref).max())

    print("KERNEL_OK")
</pallas_src>

<mosaic_0001>
module attributes {stable_mosaic.version = 11 : i64} {
  func.func @kernel(%arg0: memref<2x2x75xf32, #tpu.memory_space<vmem>>, %arg1: memref<8x10xf32, #tpu.memory_space<vmem>>, %arg2: memref<8x1xf32, #tpu.memory_space<vmem>>, %arg3: memref<71x35xf32, #tpu.memory_space<vmem>>, %arg4: memref<71x35xf32, #tpu.memory_space<vmem>>, %arg5: memref<16x40xf32, #tpu.memory_space<vmem>>, %arg6: memref<16x1xf32, #tpu.memory_space<vmem>>, %arg7: memref<31x15xf32, #tpu.memory_space<vmem>>, %arg8: memref<31x15xf32, #tpu.memory_space<vmem>>, %arg9: memref<2x16x15xf32, #tpu.memory_space<vmem>>, %arg10: memref<10x71xf32, #tpu.memory_space<vmem>>, %arg11: memref<40x31xf32, #tpu.memory_space<vmem>>) attributes {dimension_semantics = [], scalar_prefetch = 0 : i64, scratch_operands = 2 : i64, tpu.core_type = #tpu.core_type<tc>} {
    %c0 = arith.constant 0 : index
    %c0_0 = arith.constant 0 : index
    %0 = vector.load %arg1[%c0, %c0_0] : memref<8x10xf32, #tpu.memory_space<vmem>>, vector<8x10xf32>
    %c0_1 = arith.constant 0 : index
    %c0_2 = arith.constant 0 : index
    %1 = vector.load %arg2[%c0_1, %c0_2] : memref<8x1xf32, #tpu.memory_space<vmem>>, vector<8x1xf32>
    %c0_3 = arith.constant 0 : index
    %c0_4 = arith.constant 0 : index
    %2 = vector.load %arg3[%c0_3, %c0_4] : memref<71x35xf32, #tpu.memory_space<vmem>>, vector<71x35xf32>
    %c0_5 = arith.constant 0 : index
    %c0_6 = arith.constant 0 : index
    %3 = vector.load %arg4[%c0_5, %c0_6] : memref<71x35xf32, #tpu.memory_space<vmem>>, vector<71x35xf32>
    %c0_7 = arith.constant 0 : index
    %c0_8 = arith.constant 0 : index
    %4 = vector.load %arg5[%c0_7, %c0_8] : memref<16x40xf32, #tpu.memory_space<vmem>>, vector<16x40xf32>
    %c0_9 = arith.constant 0 : index
    %c0_10 = arith.constant 0 : index
    %5 = vector.load %arg6[%c0_9, %c0_10] : memref<16x1xf32, #tpu.memory_space<vmem>>, vector<16x1xf32>
    %c0_11 = arith.constant 0 : index
    %c0_12 = arith.constant 0 : index
    %6 = vector.load %arg7[%c0_11, %c0_12] : memref<31x15xf32, #tpu.memory_space<vmem>>, vector<31x15xf32>
    %c0_13 = arith.constant 0 : index
    %c0_14 = arith.constant 0 : index
    %7 = vector.load %arg8[%c0_13, %c0_14] : memref<31x15xf32, #tpu.memory_space<vmem>>, vector<31x15xf32>
    %c0_15 = arith.constant 0 : index
    %c0_16 = arith.constant 0 : index
    %c0_17 = arith.constant 0 : index
    %8 = vector.load %arg0[%c0_15, %c0_16, %c0_17] : memref<2x2x75xf32, #tpu.memory_space<vmem>>, vector<1x2x75xf32>
    %9 = vector.shape_cast %8 : vector<1x2x75xf32> to vector<2x75xf32>
    %10 = vector.extract_strided_slice %9 {offsets = [0, 0], sizes = [2, 71], strides = [1, 1]} : vector<2x75xf32> to vector<2x71xf32>
    %c0_18 = arith.constant 0 : index
    %c0_19 = arith.constant 0 : index
    %11 = vector.load %arg10[%c0_18, %c0_19] : memref<10x71xf32, #tpu.memory_space<vmem>>, vector<2x71xf32>
    tpu.vector_store %arg10[%c0_18, %c0_19], %10 {strides = array<i32>} : memref<10x71xf32, #tpu.memory_space<vmem>>, vector<2x71xf32>,
    %12 = vector.extract_strided_slice %9 {offsets = [0, 1], sizes = [2, 71], strides = [1, 1]} : vector<2x75xf32> to vector<2x71xf32>
    %c2 = arith.constant 2 : index
    %c0_20 = arith.constant 0 : index
    %13 = vector.load %arg10[%c2, %c0_20] : memref<10x71xf32, #tpu.memory_space<vmem>>, vector<2x71xf32>
    tpu.vector_store %arg10[%c2, %c0_20], %12 {strides = array<i32>} : memref<10x71xf32, #tpu.memory_space<vmem>>, vector<2x71xf32>,
    %14 = vector.extract_strided_slice %9 {offsets = [0, 2], sizes = [2, 71], strides = [1, 1]} : vector<2x75xf32> to vector<2x71xf32>
    %c4 = arith.constant 4 : index
    %c0_21 = arith.constant 0 : index
    %15 = vector.load %arg10[%c4, %c0_21] : memref<10x71xf32, #tpu.memory_space<vmem>>, vector<2x71xf32>
    tpu.vector_store %arg10[%c4, %c0_21], %14 {strides = array<i32>} : memref<10x71xf32, #tpu.memory_space<vmem>>, vector<2x71xf32>,
    %16 = vector.extract_strided_slice %9 {offsets = [0, 3], sizes = [2, 71], strides = [1, 1]} : vector<2x75xf32> to vector<2x71xf32>
    %c6 = arith.constant 6 : index
    %c0_22 = arith.constant 0 : index
    %17 = vector.load %arg10[%c6, %c0_22] : memref<10x71xf32, #tpu.memory_space<vmem>>, vector<2x71xf32>
    tpu.vector_store %arg10[%c6, %c0_22], %16 {strides = array<i32>} : memref<10x71xf32, #tpu.memory_space<vmem>>, vector<2x71xf32>,
    %18 = vector.extract_strided_slice %9 {offsets = [0, 4], sizes = [2, 71], strides = [1, 1]} : vector<2x75xf32> to vector<2x71xf32>
    %c8 = arith.constant 8 : index
    %c0_23 = arith.constant 0 : index
    %19 = vector.load %arg10[%c8, %c0_23] : memref<10x71xf32, #tpu.memory_space<vmem>>, vector<2x71xf32>
    tpu.vector_store %arg10[%c8, %c0_23], %18 {strides = array<i32>} : memref<10x71xf32, #tpu.memory_space<vmem>>, vector<2x71xf32>,
    %c0_24 = arith.constant 0 : index
    %c0_25 = arith.constant 0 : index
    %20 = vector.load %arg10[%c0_24, %c0_25] : memref<10x71xf32, #tpu.memory_space<vmem>>, vector<10x71xf32>
    %cst = arith.constant dense<0.000000e+00> : vector<8x71xf32>
    %21 = tpu.matmul %0, %20, %cst {dimension_numbers = #tpu.dot_dimension_numbers<[1], [0], [0], [1], [0, 0, 1, 1], [], []>} : vector<8x10xf32>, vector<10x71xf32>, vector<8x71xf32> -> vector<8x71xf32>
    %22 = vector.broadcast %1 : vector<8x1xf32> to vector<8x71xf32>
    %23 = arith.addf %21, %22 : vector<8x71xf32>
    %cst_26 = arith.constant 0.000000e+00 : f32
    %24 = vector.broadcast %cst_26 : f32 to vector<8x71xf32>
    %25 = arith.maximumf %23, %24 : vector<8x71xf32>
    %cst_27 = arith.constant dense<0.000000e+00> : vector<8x35xf32>
    %26 = tpu.matmul %25, %2, %cst_27 {dimension_numbers = #tpu.dot_dimension_numbers<[1], [0], [0], [1], [0, 0, 1, 1], [], []>} : vector<8x71xf32>, vector<71x35xf32>, vector<8x35xf32> -> vector<8x35xf32>
    %cst_28 = arith.constant dense<0.000000e+00> : vector<8x35xf32>
    %27 = tpu.matmul %25, %3, %cst_28 {dimension_numbers = #tpu.dot_dimension_numbers<[1], [0], [0], [1], [0, 0, 1, 1], [], []>} : vector<8x71xf32>, vector<71x35xf32>, vector<8x35xf32> -> vector<8x35xf32>
    %28 = arith.maximumf %26, %27 : vector<8x35xf32>
    %29 = vector.extract_strided_slice %28 {offsets = [0, 0], sizes = [8, 31], strides = [1, 1]} : vector<8x35xf32> to vector<8x31xf32>
    %c0_29 = arith.constant 0 : index
    %c0_30 = arith.constant 0 : index
    %30 = vector.load %arg11[%c0_29, %c0_30] : memref<40x31xf32, #tpu.memory_space<vmem>>, vector<8x31xf32>
    tpu.vector_store %arg11[%c0_29, %c0_30], %29 {strides = array<i32>} : memref<40x31xf32, #tpu.memory_space<vmem>>, vector<8x31xf32>,
    %31 = vector.extract_strided_slice %28 {offsets = [0, 1], sizes = [8, 31], strides = [1, 1]} : vector<8x35xf32> to vector<8x31xf32>
    %c8_31 = arith.constant 8 : index
    %c0_32 = arith.constant 0 : index
    %32 = vector.load %arg11[%c8_31, %c0_32] : memref<40x31xf32, #tpu.memory_space<vmem>>, vector<8x31xf32>
    tpu.vector_store %arg11[%c8_31, %c0_32], %31 {strides = array<i32>} : memref<40x31xf32, #tpu.memory_space<vmem>>, vector<8x31xf32>,
    %33 = vector.extract_strided_slice %28 {offsets = [0, 2], sizes = [8, 31], strides = [1, 1]} : vector<8x35xf32> to vector<8x31xf32>
    %c16 = arith.constant 16 : index
    %c0_33 = arith.constant 0 : index
    %34 = vector.load %arg11[%c16, %c0_33] : memref<40x31xf32, #tpu.memory_space<vmem>>, vector<8x31xf32>
    tpu.vector_store %arg11[%c16, %c0_33], %33 {strides = array<i32>} : memref<40x31xf32, #tpu.memory_space<vmem>>, vector<8x31xf32>,
    %35 = vector.extract_strided_slice %28 {offsets = [0, 3], sizes = [8, 31], strides = [1, 1]} : vector<8x35xf32> to vector<8x31xf32>
    %c24 = arith.constant 24 : index
    %c0_34 = arith.constant 0 : index
    %36 = vector.load %arg11[%c24, %c0_34] : memref<40x31xf32, #tpu.memory_space<vmem>>, vector<8x31xf32>
    tpu.vector_store %arg11[%c24, %c0_34], %35 {strides = array<i32>} : memref<40x31xf32, #tpu.memory_space<vmem>>, vector<8x31xf32>,
    %37 = vector.extract_strided_slice %28 {offsets = [0, 4], sizes = [8, 31], strides = [1, 1]} : vector<8x35xf32> to vector<8x31xf32>
    %c32 = arith.constant 32 : index
    %c0_35 = arith.constant 0 : index
    %38 = vector.load %arg11[%c32, %c0_35] : memref<40x31xf32, #tpu.memory_space<vmem>>, vector<8x31xf32>
    tpu.vector_store %arg11[%c32, %c0_35], %37 {strides = array<i32>} : memref<40x31xf32, #tpu.memory_space<vmem>>, vector<8x31xf32>,
    %c0_36 = arith.constant 0 : index
    %c0_37 = arith.constant 0 : index
    %39 = vector.load %arg11[%c0_36, %c0_37] : memref<40x31xf32, #tpu.memory_space<vmem>>, vector<40x31xf32>
    %cst_38 = arith.constant dense<0.000000e+00> : vector<16x31xf32>
    %40 = tpu.matmul %4, %39, %cst_38 {dimension_numbers = #tpu.dot_dimension_numbers<[1], [0], [0], [1], [0, 0, 1, 1], [], []>} : vector<16x40xf32>, vector<40x31xf32>, vector<16x31xf32> -> vector<16x31xf32>
    %41 = vector.broadcast %5 : vector<16x1xf32> to vector<16x31xf32>
    %42 = arith.addf %40, %41 : vector<16x31xf32>
    %cst_39 = arith.constant 0.000000e+00 : f32
    %43 = vector.broadcast %cst_39 : f32 to vector<16x31xf32>
    %44 = arith.maximumf %42, %43 : vector<16x31xf32>
    %cst_40 = arith.constant dense<0.000000e+00> : vector<16x15xf32>
    %45 = tpu.matmul %44, %6, %cst_40 {dimension_numbers = #tpu.dot_dimension_numbers<[1], [0], [0], [1], [0, 0, 1, 1], [], []>} : vector<16x31xf32>, vector<31x15xf32>, vector<16x15xf32> -> vector<16x15xf32>
    %cst_41 = arith.constant dense<0.000000e+00> : vector<16x15xf32>
    %46 = tpu.matmul %44, %7, %cst_41 {dimension_numbers = #tpu.dot_dimension_numbers<[1], [0], [0], [1], [0, 0, 1, 1], [], []>} : vector<16x31xf32>, vector<31x15xf32>, vector<16x15xf32> -> vector<16x15xf32>
    %47 = arith.maximumf %45, %46 : vector<16x15xf32>
    %c0_42 = arith.constant 0 : index
    %c0_43 = arith.constant 0 : index
    %c0_44 = arith.constant 0 : index
    %48 = vector.load %arg9[%c0_42, %c0_43, %c0_44] : memref<2x16x15xf32, #tpu.memory_space<vmem>>, vector<1x16x15xf32>
    %49 = vector.shape_cast %48 : vector<1x16x15xf32> to vector<16x15xf32>
    %50 = vector.shape_cast %47 : vector<16x15xf32> to vector<1x16x15xf32>
    tpu.vector_store %arg9[%c0_42, %c0_43, %c0_44], %50 {strides = array<i32>} : memref<2x16x15xf32, #tpu.memory_space<vmem>>, vector<1x16x15xf32>,
    %c1 = arith.constant 1 : index
    %c0_45 = arith.constant 0 : index
    %c0_46 = arith.constant 0 : index
    %51 = vector.load %arg0[%c1, %c0_45, %c0_46] : memref<2x2x75xf32, #tpu.memory_space<vmem>>, vector<1x2x75xf32>
    %52 = vector.shape_cast %51 : vector<1x2x75xf32> to vector<2x75xf32>
    %53 = vector.extract_strided_slice %52 {offsets = [0, 0], sizes = [2, 71], strides = [1, 1]} : vector<2x75xf32> to vector<2x71xf32>
    %c0_47 = arith.constant 0 : index
    %c0_48 = arith.constant 0 : index
    %54 = vector.load %arg10[%c0_47, %c0_48] : memref<10x71xf32, #tpu.memory_space<vmem>>, vector<2x71xf32>
    tpu.vector_store %arg10[%c0_47, %c0_48], %53 {strides = array<i32>} : memref<10x71xf32, #tpu.memory_space<vmem>>, vector<2x71xf32>,
    %55 = vector.extract_strided_slice %52 {offsets = [0, 1], sizes = [2, 71], strides = [1, 1]} : vector<2x75xf32> to vector<2x71xf32>
    %c2_49 = arith.constant 2 : index
    %c0_50 = arith.constant 0 : index
    %56 = vector.load %arg10[%c2_49, %c0_50] : memref<10x71xf32, #tpu.memory_space<vmem>>, vector<2x71xf32>
    tpu.vector_store %arg10[%c2_49, %c0_50], %55 {strides = array<i32>} : memref<10x71xf32, #tpu.memory_space<vmem>>, vector<2x71xf32>,
    %57 = vector.extract_strided_slice %52 {offsets = [0, 2], sizes = [2, 71], strides = [1, 1]} : vector<2x75xf32> to vector<2x71xf32>
    %c4_51 = arith.constant 4 : index
    %c0_52 = arith.constant 0 : index
    %58 = vector.load %arg10[%c4_51, %c0_52] : memref<10x71xf32, #tpu.memory_space<vmem>>, vector<2x71xf32>
    tpu.vector_store %arg10[%c4_51, %c0_52], %57 {strides = array<i32>} : memref<10x71xf32, #tpu.memory_space<vmem>>, vector<2x71xf32>,
    %59 = vector.extract_strided_slice %52 {offsets = [0, 3], sizes = [2, 71], strides = [1, 1]} : vector<2x75xf32> to vector<2x71xf32>
    %c6_53 = arith.constant 6 : index
    %c0_54 = arith.constant 0 : index
    %60 = vector.load %arg10[%c6_53, %c0_54] : memref<10x71xf32, #tpu.memory_space<vmem>>, vector<2x71xf32>
    tpu.vector_store %arg10[%c6_53, %c0_54], %59 {strides = array<i32>} : memref<10x71xf32, #tpu.memory_space<vmem>>, vector<2x71xf32>,
    %61 = vector.extract_strided_slice %52 {offsets = [0, 4], sizes = [2, 71], strides = [1, 1]} : vector<2x75xf32> to vector<2x71xf32>
    %c8_55 = arith.constant 8 : index
    %c0_56 = arith.constant 0 : index
    %62 = vector.load %arg10[%c8_55, %c0_56] : memref<10x71xf32, #tpu.memory_space<vmem>>, vector<2x71xf32>
    tpu.vector_store %arg10[%c8_55, %c0_56], %61 {strides = array<i32>} : memref<10x71xf32, #tpu.memory_space<vmem>>, vector<2x71xf32>,
    %c0_57 = arith.constant 0 : index
    %c0_58 = arith.constant 0 : index
    %63 = vector.load %arg10[%c0_57, %c0_58] : memref<10x71xf32, #tpu.memory_space<vmem>>, vector<10x71xf32>
    %cst_59 = arith.constant dense<0.000000e+00> : vector<8x71xf32>
    %64 = tpu.matmul %0, %63, %cst_59 {dimension_numbers = #tpu.dot_dimension_numbers<[1], [0], [0], [1], [0, 0, 1, 1], [], []>} : vector<8x10xf32>, vector<10x71xf32>, vector<8x71xf32> -> vector<8x71xf32>
    %65 = vector.broadcast %1 : vector<8x1xf32> to vector<8x71xf32>
    %66 = arith.addf %64, %65 : vector<8x71xf32>
    %cst_60 = arith.constant 0.000000e+00 : f32
    %67 = vector.broadcast %cst_60 : f32 to vector<8x71xf32>
    %68 = arith.maximumf %66, %67 : vector<8x71xf32>
    %cst_61 = arith.constant dense<0.000000e+00> : vector<8x35xf32>
    %69 = tpu.matmul %68, %2, %cst_61 {dimension_numbers = #tpu.dot_dimension_numbers<[1], [0], [0], [1], [0, 0, 1, 1], [], []>} : vector<8x71xf32>, vector<71x35xf32>, vector<8x35xf32> -> vector<8x35xf32>
    %cst_62 = arith.constant dense<0.000000e+00> : vector<8x35xf32>
    %70 = tpu.matmul %68, %3, %cst_62 {dimension_numbers = #tpu.dot_dimension_numbers<[1], [0], [0], [1], [0, 0, 1, 1], [], []>} : vector<8x71xf32>, vector<71x35xf32>, vector<8x35xf32> -> vector<8x35xf32>
    %71 = arith.maximumf %69, %70 : vector<8x35xf32>
    %72 = vector.extract_strided_slice %71 {offsets = [0, 0], sizes = [8, 31], strides = [1, 1]} : vector<8x35xf32> to vector<8x31xf32>
    %c0_63 = arith.constant 0 : index
    %c0_64 = arith.constant 0 : index
    %73 = vector.load %arg11[%c0_63, %c0_64] : memref<40x31xf32, #tpu.memory_space<vmem>>, vector<8x31xf32>
    tpu.vector_store %arg11[%c0_63, %c0_64], %72 {strides = array<i32>} : memref<40x31xf32, #tpu.memory_space<vmem>>, vector<8x31xf32>,
    %74 = vector.extract_strided_slice %71 {offsets = [0, 1], sizes = [8, 31], strides = [1, 1]} : vector<8x35xf32> to vector<8x31xf32>
    %c8_65 = arith.constant 8 : index
    %c0_66 = arith.constant 0 : index
    %75 = vector.load %arg11[%c8_65, %c0_66] : memref<40x31xf32, #tpu.memory_space<vmem>>, vector<8x31xf32>
    tpu.vector_store %arg11[%c8_65, %c0_66], %74 {strides = array<i32>} : memref<40x31xf32, #tpu.memory_space<vmem>>, vector<8x31xf32>,
    %76 = vector.extract_strided_slice %71 {offsets = [0, 2], sizes = [8, 31], strides = [1, 1]} : vector<8x35xf32> to vector<8x31xf32>
    %c16_67 = arith.constant 16 : index
    %c0_68 = arith.constant 0 : index
    %77 = vector.load %arg11[%c16_67, %c0_68] : memref<40x31xf32, #tpu.memory_space<vmem>>, vector<8x31xf32>
    tpu.vector_store %arg11[%c16_67, %c0_68], %76 {strides = array<i32>} : memref<40x31xf32, #tpu.memory_space<vmem>>, vector<8x31xf32>,
    %78 = vector.extract_strided_slice %71 {offsets = [0, 3], sizes = [8, 31], strides = [1, 1]} : vector<8x35xf32> to vector<8x31xf32>
    %c24_69 = arith.constant 24 : index
    %c0_70 = arith.constant 0 : index
    %79 = vector.load %arg11[%c24_69, %c0_70] : memref<40x31xf32, #tpu.memory_space<vmem>>, vector<8x31xf32>
    tpu.vector_store %arg11[%c24_69, %c0_70], %78 {strides = array<i32>} : memref<40x31xf32, #tpu.memory_space<vmem>>, vector<8x31xf32>,
    %80 = vector.extract_strided_slice %71 {offsets = [0, 4], sizes = [8, 31], strides = [1, 1]} : vector<8x35xf32> to vector<8x31xf32>
    %c32_71 = arith.constant 32 : index
    %c0_72 = arith.constant 0 : index
    %81 = vector.load %arg11[%c32_71, %c0_72] : memref<40x31xf32, #tpu.memory_space<vmem>>, vector<8x31xf32>
    tpu.vector_store %arg11[%c32_71, %c0_72], %80 {strides = array<i32>} : memref<40x31xf32, #tpu.memory_space<vmem>>, vector<8x31xf32>,
    %c0_73 = arith.constant 0 : index
    %c0_74 = arith.constant 0 : index
    %82 = vector.load %arg11[%c0_73, %c0_74] : memref<40x31xf32, #tpu.memory_space<vmem>>, vector<40x31xf32>
    %cst_75 = arith.constant dense<0.000000e+00> : vector<16x31xf32>
    %83 = tpu.matmul %4, %82, %cst_75 {dimension_numbers = #tpu.dot_dimension_numbers<[1], [0], [0], [1], [0, 0, 1, 1], [], []>} : vector<16x40xf32>, vector<40x31xf32>, vector<16x31xf32> -> vector<16x31xf32>
    %84 = vector.broadcast %5 : vector<16x1xf32> to vector<16x31xf32>
    %85 = arith.addf %83, %84 : vector<16x31xf32>
    %cst_76 = arith.constant 0.000000e+00 : f32
    %86 = vector.broadcast %cst_76 : f32 to vector<16x31xf32>
    %87 = arith.maximumf %85, %86 : vector<16x31xf32>
    %cst_77 = arith.constant dense<0.000000e+00> : vector<16x15xf32>
    %88 = tpu.matmul %87, %6, %cst_77 {dimension_numbers = #tpu.dot_dimension_numbers<[1], [0], [0], [1], [0, 0, 1, 1], [], []>} : vector<16x31xf32>, vector<31x15xf32>, vector<16x15xf32> -> vector<16x15xf32>
    %cst_78 = arith.constant dense<0.000000e+00> : vector<16x15xf32>
    %89 = tpu.matmul %87, %7, %cst_78 {dimension_numbers = #tpu.dot_dimension_numbers<[1], [0], [0], [1], [0, 0, 1, 1], [], []>} : vector<16x31xf32>, vector<31x15xf32>, vector<16x15xf32> -> vector<16x15xf32>
    %90 = arith.maximumf %88, %89 : vector<16x15xf32>
    %c1_79 = arith.constant 1 : index
    %c0_80 = arith.constant 0 : index
    %c0_81 = arith.constant 0 : index
    %91 = vector.load %arg9[%c1_79, %c0_80, %c0_81] : memref<2x16x15xf32, #tpu.memory_space<vmem>>, vector<1x16x15xf32>
    %92 = vector.shape_cast %91 : vector<1x16x15xf32> to vector<16x15xf32>
    %93 = vector.shape_cast %90 : vector<16x15xf32> to vector<1x16x15xf32>
    tpu.vector_store %arg9[%c1_79, %c0_80, %c0_81], %93 {strides = array<i32>} : memref<2x16x15xf32, #tpu.memory_space<vmem>>, vector<1x16x15xf32>,
    return
  }
}

</mosaic_0001>

<llo_original>
// kernel: encoder_forward.1
$region0: #{encoder_forward.1}
  #allocation0 [shape = 'u32[]', space=smem, size = 0x4, offset = 0x4, fixed_abs, tag = 'smem constant byte address 0x4 - core index']
  #allocation1 [shape = 'u32[144,128]{1,0:T(1,128)}', space=vmem, size = 0x12000, scoped, tag = 'internal scratch']
  #allocation2 [shape = 'f32[10,71]{1,0:T(8,128)}', space=vmem, size = 0x2000, scoped, tag = 'scratch operand']
  #allocation3 [shape = 'f32[40,31]{1,0:T(8,128)}', space=vmem, size = 0x5000, scoped, tag = 'scratch operand']
  %s0 = inlined_call_operand.vmem [shape: f32[2,2,75], index: 0, kind: input, shape index: {}]
  %s1 = inlined_call_operand.vmem [shape: f32[8,10], index: 1, kind: input, shape index: {}]
  %s2 = inlined_call_operand.vmem [shape: f32[8,1], index: 2, kind: input, shape index: {}]
  %s3 = inlined_call_operand.vmem [shape: f32[71,35], index: 3, kind: input, shape index: {}]
  %s4 = inlined_call_operand.vmem [shape: f32[71,35], index: 4, kind: input, shape index: {}]
  %s5 = inlined_call_operand.vmem [shape: f32[16,40], index: 5, kind: input, shape index: {}]
  %s6 = inlined_call_operand.vmem [shape: f32[16,1], index: 6, kind: input, shape index: {}]
  %s7 = inlined_call_operand.vmem [shape: f32[31,15], index: 7, kind: input, shape index: {}]
  %s8 = inlined_call_operand.vmem [shape: f32[31,15], index: 8, kind: input, shape index: {}]
  %s9 = inlined_call_operand.vmem [shape: f32[2,16,15], index: 9, kind: output, shape index: {}]
  %s10 = sld [smem:[#allocation0]]
  $region46: #{encoder_forward.1} parent=0
    _
  %s12 = ssub.s32 1, %s10
  %s13 = scalar_select 0, %s12, %s10
  // Predicated region
  $region2: #{encoder_forward.1} parent=0 // pred_check
    _
  $region3: #{encoder_forward.1} parent=0 // pred_check_branch
    %15 = sbr.rel (0) target = $region5
  $region4: #{encoder_forward.1} parent=0 // pred_region
    _
  $region5: #{encoder_forward.1} parent=0 // pred_fallthru
    _
  // Predicated region
  $region6: #{encoder_forward.1} parent=0 // pred_check
    _
  $region7: #{encoder_forward.1} parent=0 // pred_check_branch
    %17 = sbr.rel (0) target = $region9
  $region8: #{encoder_forward.1} parent=0 // pred_region
    _
  $region9: #{encoder_forward.1} parent=0 // pred_fallthru
    _
  // Predicated region
  $region10: #{encoder_forward.1} parent=0 // pred_check
    _
  $region11: #{encoder_forward.1} parent=0 // pred_check_branch
    %19 = sbr.rel (0) target = $region13
  $region12: #{encoder_forward.1} parent=0 // pred_region
    _
  $region13: #{encoder_forward.1} parent=0 // pred_fallthru
    _
  // Predicated region
  $region14: #{encoder_forward.1} parent=0 // pred_check
    _
  $region15: #{encoder_forward.1} parent=0 // pred_check_branch
    %21 = sbr.rel (0) target = $region17
  $region16: #{encoder_forward.1} parent=0 // pred_region
    _
  $region17: #{encoder_forward.1} parent=0 // pred_fallthru
    _
  // Predicated region
  $region18: #{encoder_forward.1} parent=0 // pred_check
    _
  $region19: #{encoder_forward.1} parent=0 // pred_check_branch
    %23 = sbr.rel (0) target = $region21
  $region20: #{encoder_forward.1} parent=0 // pred_region
    _
  $region21: #{encoder_forward.1} parent=0 // pred_fallthru
    _
  // Predicated region
  $region22: #{encoder_forward.1} parent=0 // pred_check
    _
  $region23: #{encoder_forward.1} parent=0 // pred_check_branch
    %25 = sbr.rel (0) target = $region25
  $region24: #{encoder_forward.1} parent=0 // pred_region
    _
  $region25: #{encoder_forward.1} parent=0 // pred_fallthru
    _
  // Predicated region
  $region26: #{encoder_forward.1} parent=0 // pred_check
    _
  $region27: #{encoder_forward.1} parent=0 // pred_check_branch
    %27 = sbr.rel (0) target = $region29
  $region28: #{encoder_forward.1} parent=0 // pred_region
    _
  $region29: #{encoder_forward.1} parent=0 // pred_fallthru
    _
  // Predicated region
  $region30: #{encoder_forward.1} parent=0 // pred_check
    _
  $region31: #{encoder_forward.1} parent=0 // pred_check_branch
    %29 = sbr.rel (0) target = $region33
  $region32: #{encoder_forward.1} parent=0 // pred_region
    _
  $region33: #{encoder_forward.1} parent=0 // pred_fallthru
    _
  // Predicated region
  $region34: #{encoder_forward.1} parent=0 // pred_check
    _
  $region35: #{encoder_forward.1} parent=0 // pred_check_branch
    %31 = sbr.rel (0) target = $region37
  $region36: #{encoder_forward.1} parent=0 // pred_region
    _
  $region37: #{encoder_forward.1} parent=0 // pred_fallthru
    _
  %v32 = vld [vmem:[%s1] sm:$0xff]
  %v33 = vld [vmem:[%s2] sm:$0xff]
  %v34 = vld [vmem:[%s3] sm:$0xff]
  %v35 = vld [vmem:[%s3 + $0x8] sm:$0xff]
  %v36 = vld [vmem:[%s3 + $0x10] sm:$0xff]
  %v37 = vld [vmem:[%s3 + $0x18] sm:$0xff]
  %v38 = vld [vmem:[%s3 + $0x20] sm:$0xff]
  %v39 = vld [vmem:[%s3 + $0x28] sm:$0xff]
  %v40 = vld [vmem:[%s3 + $0x30] sm:$0xff]
  %v41 = vld [vmem:[%s3 + $0x38] sm:$0xff]
  %v42 = vld [vmem:[%s3 + $0x40] sm:$0x7f]
  %v43 = vld [vmem:[%s4] sm:$0xff]
  %v44 = vld [vmem:[%s4 + $0x8] sm:$0xff]
  %v45 = vld [vmem:[%s4 + $0x10] sm:$0xff]
  %v46 = vld [vmem:[%s4 + $0x18] sm:$0xff]
  %v47 = vld [vmem:[%s4 + $0x20] sm:$0xff]
  %v48 = vld [vmem:[%s4 + $0x28] sm:$0xff]
  %v49 = vld [vmem:[%s4 + $0x30] sm:$0xff]
  %v50 = vld [vmem:[%s4 + $0x38] sm:$0xff]
  %v51 = vld [vmem:[%s4 + $0x40] sm:$0x7f]
  %v52 = vld [vmem:[%s5] sm:$0xff]
  %v53 = vld [vmem:[%s5 + $0x8] sm:$0xff]
  %v54 = vld [vmem:[%s6] sm:$0xff]
  %v55 = vld [vmem:[%s6 + $0x8] sm:$0xff]
  %v56 = vld [vmem:[%s7] sm:$0xff]
  %v57 = vld [vmem:[%s7 + $0x8] sm:$0xff]
  %v58 = vld [vmem:[%s7 + $0x10] sm:$0xff]
  %v59 = vld [vmem:[%s7 + $0x18] sm:$0x7f]
  %v60 = vld [vmem:[%s8] sm:$0xff]
  %v61 = vld [vmem:[%s8 + $0x8] sm:$0xff]
  %v62 = vld [vmem:[%s8 + $0x10] sm:$0xff]
  %v63 = vld [vmem:[%s8 + $0x18] sm:$0x7f]
  %v64 = vld [vmem:[%s0] sm:$0x3]
  %vm65 = vcmask 574464
  %66 = vst.msk [vmem:[#allocation2] sm:$0x3] %vm65, %v64
  %68 = vrot.lane.b32.xlu0 %v64, 127
  %v69 = vpop.permute.xlu0 %68
  %71 = vst.msk [vmem:[#allocation2 + $0x2] sm:$0x3] %vm65, %v69
  %72 = vrot.lane.b32.xlu0 %v64, 126
  %v73 = vpop.permute.xlu0 %72
  %75 = vst.msk [vmem:[#allocation2 + $0x4] sm:$0x3] %vm65, %v73
  %76 = vrot.lane.b32.xlu0 %v64, 125
  %v77 = vpop.permute.xlu0 %76
  %79 = vst.msk [vmem:[#allocation2 + $0x6] sm:$0x3] %vm65, %v77
  %80 = vrot.lane.b32.xlu0 %v64, 124
  %v81 = vpop.permute.xlu0 %80
  %83 = vst.msk [vmem:[#allocation2 + $0x8] sm:$0x3] %vm65, %v81
  %v84 = vld [vmem:[#allocation2] sm:$0xff]
  %v85 = vld [vmem:[#allocation2 + $0x8] sm:$0x3]
  %87 = vset.pattern.permute.xlu0 0
  %88 = vperm.xlu0 %87, %v33
  %v89 = vpop.permute.xlu0 %88
  %vm91 = vcmask 80896
  %v93 = vsel %vm91, %v32, 0
  %vm95 = vcmask 1041408
  %v97 = vsel %vm95, %v85, 0
  %99 = vmatprep.subr.mxu0 0.0
  %100 = vmatpush1.msra.mxu0 %v84
  %101 = vmatprep.subr.mxu0 0.0
  %102 = vmatpush1.msra.mxu0 %v97
  %103 = vmatprep.subr.mxu0 0.0
  %104 = vmatpush1.msra.mxu0 0.0
  %105 = vmatprep.subr.mxu0 0.0
  %106 = vmatpush1.msra.mxu0 0.0
  %107 = vmatprep.subr.mxu0 0.0
  %108 = vmatpush1.msra.mxu0 0.0
  %109 = vmatprep.subr.mxu0 0.0
  %110 = vmatpush1.msra.mxu0 0.0
  %111 = vmatprep.subr.mxu0 0.0
  %112 = vmatpush1.msra.mxu0 0.0
  %113 = vmatprep.subr.mxu0 0.0
  %114 = vmatpush1.msra.mxu0 0.0
  %115 = vmatprep.subr.mxu0 0.0
  %116 = vmatpush1.msra.mxu0 0.0
  %117 = vmatprep.subr.mxu0 0.0
  %118 = vmatpush1.msra.mxu0 0.0
  %119 = vmatprep.subr.mxu0 0.0
  %120 = vmatpush1.msra.mxu0 0.0
  %121 = vmatprep.subr.mxu0 0.0
  %122 = vmatpush1.msra.mxu0 0.0
  %123 = vmatprep.subr.mxu0 0.0
  %124 = vmatpush1.msra.mxu0 0.0
  %125 = vmatprep.subr.mxu0 0.0
  %126 = vmatpush1.msra.mxu0 0.0
  %127 = vmatprep.subr.mxu0 0.0
  %128 = vmatpush1.msra.mxu0 0.0
  %129 = vmatprep.subr.mxu0 0.0
  %130 = vmatpush1.msra.mxu0 0.0
  %131 = vmatprep.subr.mxu0 0.0
  %132 = vmatpush1.msra.mxu0 0.0
  %133 = vmatprep.subr.mxu0 0.0
  %134 = vmatpush1.msra.mxu0 0.0
  %135 = vmatprep.subr.mxu0 0.0
  %136 = vmatpush1.msra.mxu0 0.0
  %137 = vmatprep.subr.mxu0 0.0
  %138 = vmatpush1.msra.mxu0 0.0
  %139 = vmatprep.subr.mxu0 0.0
  %140 = vmatpush1.msra.mxu0 0.0
  %141 = vmatprep.subr.mxu0 0.0
  %142 = vmatpush1.msra.mxu0 0.0
  %143 = vmatprep.subr.mxu0 0.0
  %144 = vmatpush1.msra.mxu0 0.0
  %145 = vmatprep.subr.mxu0 0.0
  %146 = vmatpush1.msra.mxu0 0.0
  %147 = vmatprep.subr.mxu0 0.0
  %148 = vmatpush1.msra.mxu0 0.0
  %149 = vmatprep.subr.mxu0 0.0
  %150 = vmatpush1.msra.mxu0 0.0
  %151 = vmatprep.subr.mxu0 0.0
  %152 = vmatpush1.msra.mxu0 0.0
  %153 = vmatprep.subr.mxu0 0.0
  %154 = vmatpush1.msra.mxu0 0.0
  %155 = vmatprep.subr.mxu0 0.0
  %156 = vmatpush1.msra.mxu0 0.0
  %157 = vmatprep.subr.mxu0 0.0
  %158 = vmatpush1.msra.mxu0 0.0
  %159 = vmatprep.subr.mxu0 0.0
  %160 = vmatpush1.msra.mxu0 0.0
  %161 = vmatprep.subr.mxu0 0.0
  %162 = vmatpush1.msra.mxu0 0.0
  %163 = vmatprep.mubr.f32.mxu0 0.0
  %164 = vmatmul.mubr.f32.gmra.mrb[0].mxu0 %v93
  %v165 = vpop.f32.mrb[0].mxu0
  %v166 = vadd.f32 %v89, %v165
  %v167 = vpop.f32.mrb[0].mxu0
  %168 = vdwg.mxu0
  %v169 = vmax.f32 %v166, 0.0
  %vm170 = vcmask 580608
  %v172 = vsel %vm170, %v169, 0
  %vm174 = vcmask 1046528
  %v176 = vsel %vm174, %v42, 0
  %178 = vmatprep.subr.mxu0 0.0
  %179 = vmatpush1.msra.mxu0 %v34
  %180 = vmatprep.subr.mxu0 0.0
  %181 = vmatpush1.msra.mxu0 %v35
  %182 = vmatprep.subr.mxu0 0.0
  %183 = vmatpush1.msra.mxu0 %v36
  %184 = vmatprep.subr.mxu0 0.0
  %185 = vmatpush1.msra.mxu0 %v37
  %186 = vmatprep.subr.mxu0 0.0
  %187 = vmatpush1.msra.mxu0 %v38
  %188 = vmatprep.subr.mxu0 0.0
  %189 = vmatpush1.msra.mxu0 %v39
  %190 = vmatprep.subr.mxu0 0.0
  %191 = vmatpush1.msra.mxu0 %v40
  %192 = vmatprep.subr.mxu0 0.0
  %193 = vmatpush1.msra.mxu0 %v41
  %194 = vmatprep.subr.mxu0 0.0
  %195 = vmatpush1.msra.mxu0 %v176
  %196 = vmatprep.subr.mxu0 0.0
  %197 = vmatpush1.msra.mxu0 0.0
  %198 = vmatprep.subr.mxu0 0.0
  %199 = vmatpush1.msra.mxu0 0.0
  %200 = vmatprep.subr.mxu0 0.0
  %201 = vmatpush1.msra.mxu0 0.0
  %202 = vmatprep.subr.mxu0 0.0
  %203 = vmatpush1.msra.mxu0 0.0
  %204 = vmatprep.subr.mxu0 0.0
  %205 = vmatpush1.msra.mxu0 0.0
  %206 = vmatprep.subr.mxu0 0.0
  %207 = vmatpush1.msra.mxu0 0.0
  %208 = vmatprep.subr.mxu0 0.0
  %209 = vmatpush1.msra.mxu0 0.0
  %210 = vmatprep.subr.mxu0 0.0
  %211 = vmatpush1.msra.mxu0 0.0
  %212 = vmatprep.subr.mxu0 0.0
  %213 = vmatpush1.msra.mxu0 0.0
  %214 = vmatprep.subr.mxu0 0.0
  %215 = vmatpush1.msra.mxu0 0.0
  %216 = vmatprep.subr.mxu0 0.0
  %217 = vmatpush1.msra.mxu0 0.0
  %218 = vmatprep.subr.mxu0 0.0
  %219 = vmatpush1.msra.mxu0 0.0
  %220 = vmatprep.subr.mxu0 0.0
  %221 = vmatpush1.msra.mxu0 0.0
  %222 = vmatprep.subr.mxu0 0.0
  %223 = vmatpush1.msra.mxu0 0.0
  %224 = vmatprep.subr.mxu0 0.0
  %225 = vmatpush1.msra.mxu0 0.0
  %226 = vmatprep.subr.mxu0 0.0
  %227 = vmatpush1.msra.mxu0 0.0
  %228 = vmatprep.subr.mxu0 0.0
  %229 = vmatpush1.msra.mxu0 0.0
  %230 = vmatprep.subr.mxu0 0.0
  %231 = vmatpush1.msra.mxu0 0.0
  %232 = vmatprep.subr.mxu0 0.0
  %233 = vmatpush1.msra.mxu0 0.0
  %234 = vmatprep.subr.mxu0 0.0
  %235 = vmatpush1.msra.mxu0 0.0
  %236 = vmatprep.subr.mxu0 0.0
  %237 = vmatpush1.msra.mxu0 0.0
  %238 = vmatprep.subr.mxu0 0.0
  %239 = vmatpush1.msra.mxu0 0.0
  %240 = vmatprep.subr.mxu0 0.0
  %241 = vmatpush1.msra.mxu0 0.0
  %242 = vmatprep.mubr.f32.mxu0 0.0
  %243 = vmatmul.mubr.f32.gmra.mrb[0].mxu0 %v172
  %v244 = vpop.f32.mrb[0].mxu0
  %v245 = vadd.f32 0.0, %v244
  %v246 = vpop.f32.mrb[0].mxu0
  %247 = vdwg.mxu0
  %v249 = vsel %vm174, %v51, 0
  %251 = vmatprep.subr.mxu0 0.0
  %252 = vmatpush1.msra.mxu0 %v43
  %253 = vmatprep.subr.mxu0 0.0
  %254 = vmatpush1.msra.mxu0 %v44
  %255 = vmatprep.subr.mxu0 0.0
  %256 = vmatpush1.msra.mxu0 %v45
  %257 = vmatprep.subr.mxu0 0.0
  %258 = vmatpush1.msra.mxu0 %v46
  %259 = vmatprep.subr.mxu0 0.0
  %260 = vmatpush1.msra.mxu0 %v47
  %261 = vmatprep.subr.mxu0 0.0
  %262 = vmatpush1.msra.mxu0 %v48
  %263 = vmatprep.subr.mxu0 0.0
  %264 = vmatpush1.msra.mxu0 %v49
  %265 = vmatprep.subr.mxu0 0.0
  %266 = vmatpush1.msra.mxu0 %v50
  %267 = vmatprep.subr.mxu0 0.0
  %268 = vmatpush1.msra.mxu0 %v249
  %269 = vmatprep.subr.mxu0 0.0
  %270 = vmatpush1.msra.mxu0 0.0
  %271 = vmatprep.subr.mxu0 0.0
  %272 = vmatpush1.msra.mxu0 0.0
  %273 = vmatprep.subr.mxu0 0.0
  %274 = vmatpush1.msra.mxu0 0.0
  %275 = vmatprep.subr.mxu0 0.0
  %276 = vmatpush1.msra.mxu0 0.0
  %277 = vmatprep.subr.mxu0 0.0
  %278 = vmatpush1.msra.mxu0 0.0
  %279 = vmatprep.subr.mxu0 0.0
  %280 = vmatpush1.msra.mxu0 0.0
  %281 = vmatprep.subr.mxu0 0.0
  %282 = vmatpush1.msra.mxu0 0.0
  %283 = vmatprep.subr.mxu0 0.0
  %284 = vmatpush1.msra.mxu0 0.0
  %285 = vmatprep.subr.mxu0 0.0
  %286 = vmatpush1.msra.mxu0 0.0
  %287 = vmatprep.subr.mxu0 0.0
  %288 = vmatpush1.msra.mxu0 0.0
  %289 = vmatprep.subr.mxu0 0.0
  %290 = vmatpush1.msra.mxu0 0.0
  %291 = vmatprep.subr.mxu0 0.0
  %292 = vmatpush1.msra.mxu0 0.0
  %293 = vmatprep.subr.mxu0 0.0
  %294 = vmatpush1.msra.mxu0 0.0
  %295 = vmatprep.subr.mxu0 0.0
  %296 = vmatpush1.msra.mxu0 0.0
  %297 = vmatprep.subr.mxu0 0.0
  %298 = vmatpush1.msra.mxu0 0.0
  %299 = vmatprep.subr.mxu0 0.0
  %300 = vmatpush1.msra.mxu0 0.0
  %301 = vmatprep.subr.mxu0 0.0
  %302 = vmatpush1.msra.mxu0 0.0
  %303 = vmatprep.subr.mxu0 0.0
  %304 = vmatpush1.msra.mxu0 0.0
  %305 = vmatprep.subr.mxu0 0.0
  %306 = vmatpush1.msra.mxu0 0.0
  %307 = vmatprep.subr.mxu0 0.0
  %308 = vmatpush1.msra.mxu0 0.0
  %309 = vmatprep.subr.mxu0 0.0
  %310 = vmatpush1.msra.mxu0 0.0
  %311 = vmatprep.subr.mxu0 0.0
  %312 = vmatpush1.msra.mxu0 0.0
  %313 = vmatprep.subr.mxu0 0.0
  %314 = vmatpush1.msra.mxu0 0.0
  %315 = vmatprep.mubr.f32.mxu0 0.0
  %316 = vmatmul.mubr.f32.gmra.mrb[0].mxu0 %v172
  %v317 = vpop.f32.mrb[0].mxu0
  %v318 = vadd.f32 0.0, %v317
  %v319 = vpop.f32.mrb[0].mxu0
  %320 = vdwg.mxu0
  %v321 = vmax.f32 %v245, %v318
  %vm322 = vcmask 252928
  %323 = vst.msk [vmem:[#allocation3] sm:$0xff] %vm322, %v321
  %325 = vrot.lane.b32.xlu0 %v321, 127
  %v326 = vpop.permute.xlu0 %325
  %328 = vst.msk [vmem:[#allocation3 + $0x8] sm:$0xff] %vm322, %v326
  %329 = vrot.lane.b32.xlu0 %v321, 126
  %v330 = vpop.permute.xlu0 %329
  %332 = vst.msk [vmem:[#allocation3 + $0x10] sm:$0xff] %vm322, %v330
  %333 = vrot.lane.b32.xlu0 %v321, 125
  %v334 = vpop.permute.xlu0 %333
  %336 = vst.msk [vmem:[#allocation3 + $0x18] sm:$0xff] %vm322, %v334
  %337 = vrot.lane.b32.xlu0 %v321, 124
  %v338 = vpop.permute.xlu0 %337
  %340 = vst.msk [vmem:[#allocation3 + $0x20] sm:$0xff] %vm322, %v338
  %v341 = vld [vmem:[#allocation3] sm:$0xff]
  %v342 = vld [vmem:[#allocation3 + $0x8] sm:$0xff]
  %v343 = vld [vmem:[#allocation3 + $0x10] sm:$0xff]
  %v344 = vld [vmem:[#allocation3 + $0x18] sm:$0xff]
  %v345 = vld [vmem:[#allocation3 + $0x20] sm:$0xff]
  %347 = vset.pattern.permute.xlu0 0
  %348 = vperm.xlu0 %347, %v54
  %v349 = vpop.permute.xlu0 %348
  %352 = vset.pattern.permute.xlu0 0
  %353 = vperm.xlu0 %352, %v55
  %v354 = vpop.permute.xlu0 %353
  %vm356 = vcmask 326656
  %v358 = vsel %vm356, %v52, 0
  %v361 = vsel %vm356, %v53, 0
  %363 = vmatprep.subr.mxu0 0.0
  %364 = vmatpush1.msra.mxu0 %v341
  %365 = vmatprep.subr.mxu0 0.0
  %366 = vmatpush1.msra.mxu0 %v342
  %367 = vmatprep.subr.mxu0 0.0
  %368 = vmatpush1.msra.mxu0 %v343
  %369 = vmatprep.subr.mxu0 0.0
  %370 = vmatpush1.msra.mxu0 %v344
  %371 = vmatprep.subr.mxu0 0.0
  %372 = vmatpush1.msra.mxu0 %v345
  %373 = vmatprep.subr.mxu0 0.0
  %374 = vmatpush1.msra.mxu0 0.0
  %375 = vmatprep.subr.mxu0 0.0
  %376 = vmatpush1.msra.mxu0 0.0
  %377 = vmatprep.subr.mxu0 0.0
  %378 = vmatpush1.msra.mxu0 0.0
  %379 = vmatprep.subr.mxu0 0.0
  %380 = vmatpush1.msra.mxu0 0.0
  %381 = vmatprep.subr.mxu0 0.0
  %382 = vmatpush1.msra.mxu0 0.0
  %383 = vmatprep.subr.mxu0 0.0
  %384 = vmatpush1.msra.mxu0 0.0
  %385 = vmatprep.subr.mxu0 0.0
  %386 = vmatpush1.msra.mxu0 0.0
  %387 = vmatprep.subr.mxu0 0.0
  %388 = vmatpush1.msra.mxu0 0.0
  %389 = vmatprep.subr.mxu0 0.0
  %390 = vmatpush1.msra.mxu0 0.0
  %391 = vmatprep.subr.mxu0 0.0
  %392 = vmatpush1.msra.mxu0 0.0
  %393 = vmatprep.subr.mxu0 0.0
  %394 = vmatpush1.msra.mxu0 0.0
  %395 = vmatprep.subr.mxu0 0.0
  %396 = vmatpush1.msra.mxu0 0.0
  %397 = vmatprep.subr.mxu0 0.0
  %398 = vmatpush1.msra.mxu0 0.0
  %399 = vmatprep.subr.mxu0 0.0
  %400 = vmatpush1.msra.mxu0 0.0
  %401 = vmatprep.subr.mxu0 0.0
  %402 = vmatpush1.msra.mxu0 0.0
  %403 = vmatprep.subr.mxu0 0.0
  %404 = vmatpush1.msra.mxu0 0.0
  %405 = vmatprep.subr.mxu0 0.0
  %406 = vmatpush1.msra.mxu0 0.0
  %407 = vmatprep.subr.mxu0 0.0
  %408 = vmatpush1.msra.mxu0 0.0
  %409 = vmatprep.subr.mxu0 0.0
  %410 = vmatpush1.msra.mxu0 0.0
  %411 = vmatprep.subr.mxu0 0.0
  %412 = vmatpush1.msra.mxu0 0.0
  %413 = vmatprep.subr.mxu0 0.0
  %414 = vmatpush1.msra.mxu0 0.0
  %415 = vmatprep.subr.mxu0 0.0
  %416 = vmatpush1.msra.mxu0 0.0
  %417 = vmatprep.subr.mxu0 0.0
  %418 = vmatpush1.msra.mxu0 0.0
  %419 = vmatprep.subr.mxu0 0.0
  %420 = vmatpush1.msra.mxu0 0.0
  %421 = vmatprep.subr.mxu0 0.0
  %422 = vmatpush1.msra.mxu0 0.0
  %423 = vmatprep.subr.mxu0 0.0
  %424 = vmatpush1.msra.mxu0 0.0
  %425 = vmatprep.subr.mxu0 0.0
  %426 = vmatpush1.msra.mxu0 0.0
  %427 = vmatprep.mubr.f32.mxu0 0.0
  %428 = vmatmul.mubr.f32.gmra.mrb[0].mxu0 %v358
  %v429 = vpop.f32.mrb[0].mxu0
  %v430 = vadd.f32 %v349, %v429
  %v431 = vpop.f32.mrb[0].mxu0
  %432 = vmatprep.mubr.f32.mxu0 0.0
  %433 = vmatmul.mubr.f32.gmra.mrb[0].mxu0 %v361
  %v434 = vpop.f32.mrb[0].mxu0
  %v435 = vadd.f32 %v354, %v434
  %v436 = vpop.f32.mrb[0].mxu0
  %437 = vdwg.mxu0
  %v438 = vmax.f32 %v430, 0.0
  %v439 = vmax.f32 %v435, 0.0
  %v441 = vsel %vm322, %v438, 0
  %v444 = vsel %vm322, %v439, 0
  %v447 = vsel %vm174, %v59, 0
  %449 = vmatprep.subr.mxu0 0.0
  %450 = vmatpush1.msra.mxu0 %v56
  %451 = vmatprep.subr.mxu0 0.0
  %452 = vmatpush1.msra.mxu0 %v57
  %453 = vmatprep.subr.mxu0 0.0
  %454 = vmatpush1.msra.mxu0 %v58
  %455 = vmatprep.subr.mxu0 0.0
  %456 = vmatpush1.msra.mxu0 %v447
  %457 = vmatprep.subr.mxu0 0.0
  %458 = vmatpush1.msra.mxu0 0.0
  %459 = vmatprep.subr.mxu0 0.0
  %460 = vmatpush1.msra.mxu0 0.0
  %461 = vmatprep.subr.mxu0 0.0
  %462 = vmatpush1.msra.mxu0 0.0
  %463 = vmatprep.subr.mxu0 0.0
  %464 = vmatpush1.msra.mxu0 0.0
  %465 = vmatprep.subr.mxu0 0.0
  %466 = vmatpush1.msra.mxu0 0.0
  %467 = vmatprep.subr.mxu0 0.0
  %468 = vmatpush1.msra.mxu0 0.0
  %469 = vmatprep.subr.mxu0 0.0
  %470 = vmatpush1.msra.mxu0 0.0
  %471 = vmatprep.subr.mxu0 0.0
  %472 = vmatpush1.msra.mxu0 0.0
  %473 = vmatprep.subr.mxu0 0.0
  %474 = vmatpush1.msra.mxu0 0.0
  %475 = vmatprep.subr.mxu0 0.0
  %476 = vmatpush1.msra.mxu0 0.0
  %477 = vmatprep.subr.mxu0 0.0
  %478 = vmatpush1.msra.mxu0 0.0
  %479 = vmatprep.subr.mxu0 0.0
  %480 = vmatpush1.msra.mxu0 0.0
  %481 = vmatprep.subr.mxu0 0.0
  %482 = vmatpush1.msra.mxu0 0.0
  %483 = vmatprep.subr.mxu0 0.0
  %484 = vmatpush1.msra.mxu0 0.0
  %485 = vmatprep.subr.mxu0 0.0
  %486 = vmatpush1.msra.mxu0 0.0
  %487 = vmatprep.subr.mxu0 0.0
  %488 = vmatpush1.msra.mxu0 0.0
  %489 = vmatprep.subr.mxu0 0.0
  %490 = vmatpush1.msra.mxu0 0.0
  %491 = vmatprep.subr.mxu0 0.0
  %492 = vmatpush1.msra.mxu0 0.0
  %493 = vmatprep.subr.mxu0 0.0
  %494 = vmatpush1.msra.mxu0 0.0
  %495 = vmatprep.subr.mxu0 0.0
  %496 = vmatpush1.msra.mxu0 0.0
  %497 = vmatprep.subr.mxu0 0.0
  %498 = vmatpush1.msra.mxu0 0.0
  %499 = vmatprep.subr.mxu0 0.0
  %500 = vmatpush1.msra.mxu0 0.0
  %501 = vmatprep.subr.mxu0 0.0
  %502 = vmatpush1.msra.mxu0 0.0
  %503 = vmatprep.subr.mxu0 0.0
  %504 = vmatpush1.msra.mxu0 0.0
  %505 = vmatprep.subr.mxu0 0.0
  %506 = vmatpush1.msra.mxu0 0.0
  %507 = vmatprep.subr.mxu0 0.0
  %508 = vmatpush1.msra.mxu0 0.0
  %509 = vmatprep.subr.mxu0 0.0
  %510 = vmatpush1.msra.mxu0 0.0
  %511 = vmatprep.subr.mxu0 0.0
  %512 = vmatpush1.msra.mxu0 0.0
  %513 = vmatprep.mubr.f32.mxu0 0.0
  %514 = vmatmul.mubr.f32.gmra.mrb[0].mxu0 %v441
  %v515 = vpop.f32.mrb[0].mxu0
  %v516 = vadd.f32 0.0, %v515
  %v517 = vpop.f32.mrb[0].mxu0
  %518 = vmatprep.mubr.f32.mxu0 0.0
  %519 = vmatmul.mubr.f32.gmra.mrb[0].mxu0 %v444
  %v520 = vpop.f32.mrb[0].mxu0
  %v521 = vadd.f32 0.0, %v520
  %v522 = vpop.f32.mrb[0].mxu0
  %523 = vdwg.mxu0
  %v525 = vsel %vm174, %v63, 0
  %527 = vmatprep.subr.mxu0 0.0
  %528 = vmatpush1.msra.mxu0 %v60
  %529 = vmatprep.subr.mxu0 0.0
  %530 = vmatpush1.msra.mxu0 %v61
  %531 = vmatprep.subr.mxu0 0.0
  %532 = vmatpush1.msra.mxu0 %v62
  %533 = vmatprep.subr.mxu0 0.0
  %534 = vmatpush1.msra.mxu0 %v525
  %535 = vmatprep.subr.mxu0 0.0
  %536 = vmatpush1.msra.mxu0 0.0
  %537 = vmatprep.subr.mxu0 0.0
  %538 = vmatpush1.msra.mxu0 0.0
  %539 = vmatprep.subr.mxu0 0.0
  %540 = vmatpush1.msra.mxu0 0.0
  %541 = vmatprep.subr.mxu0 0.0
  %542 = vmatpush1.msra.mxu0 0.0
  %543 = vmatprep.subr.mxu0 0.0
  %544 = vmatpush1.msra.mxu0 0.0
  %545 = vmatprep.subr.mxu0 0.0
  %546 = vmatpush1.msra.mxu0 0.0
  %547 = vmatprep.subr.mxu0 0.0
  %548 = vmatpush1.msra.mxu0 0.0
  %549 = vmatprep.subr.mxu0 0.0
  %550 = vmatpush1.msra.mxu0 0.0
  %551 = vmatprep.subr.mxu0 0.0
  %552 = vmatpush1.msra.mxu0 0.0
  %553 = vmatprep.subr.mxu0 0.0
  %554 = vmatpush1.msra.mxu0 0.0
  %555 = vmatprep.subr.mxu0 0.0
  %556 = vmatpush1.msra.mxu0 0.0
  %557 = vmatprep.subr.mxu0 0.0
  %558 = vmatpush1.msra.mxu0 0.0
  %559 = vmatprep.subr.mxu0 0.0
  %560 = vmatpush1.msra.mxu0 0.0
  %561 = vmatprep.subr.mxu0 0.0
  %562 = vmatpush1.msra.mxu0 0.0
  %563 = vmatprep.subr.mxu0 0.0
  %564 = vmatpush1.msra.mxu0 0.0
  %565 = vmatprep.subr.mxu0 0.0
  %566 = vmatpush1.msra.mxu0 0.0
  %567 = vmatprep.subr.mxu0 0.0
  %568 = vmatpush1.msra.mxu0 0.0
  %569 = vmatprep.subr.mxu0 0.0
  %570 = vmatpush1.msra.mxu0 0.0
  %571 = vmatprep.subr.mxu0 0.0
  %572 = vmatpush1.msra.mxu0 0.0
  %573 = vmatprep.subr.mxu0 0.0
  %574 = vmatpush1.msra.mxu0 0.0
  %575 = vmatprep.subr.mxu0 0.0
  %576 = vmatpush1.msra.mxu0 0.0
  %577 = vmatprep.subr.mxu0 0.0
  %578 = vmatpush1.msra.mxu0 0.0
  %579 = vmatprep.subr.mxu0 0.0
  %580 = vmatpush1.msra.mxu0 0.0
  %581 = vmatprep.subr.mxu0 0.0
  %582 = vmatpush1.msra.mxu0 0.0
  %583 = vmatprep.subr.mxu0 0.0
  %584 = vmatpush1.msra.mxu0 0.0
  %585 = vmatprep.subr.mxu0 0.0
  %586 = vmatpush1.msra.mxu0 0.0
  %587 = vmatprep.subr.mxu0 0.0
  %588 = vmatpush1.msra.mxu0 0.0
  %589 = vmatprep.subr.mxu0 0.0
  %590 = vmatpush1.msra.mxu0 0.0
  %591 = vmatprep.mubr.f32.mxu0 0.0
  %592 = vmatmul.mubr.f32.gmra.mrb[0].mxu0 %v441
  %v593 = vpop.f32.mrb[0].mxu0
  %v594 = vadd.f32 0.0, %v593
  %v595 = vpop.f32.mrb[0].mxu0
  %596 = vmatprep.mubr.f32.mxu0 0.0
  %597 = vmatmul.mubr.f32.gmra.mrb[0].mxu0 %v444
  %v598 = vpop.f32.mrb[0].mxu0
  %v599 = vadd.f32 0.0, %v598
  %v600 = vpop.f32.mrb[0].mxu0
  %601 = vdwg.mxu0
  %v602 = vmax.f32 %v516, %v594
  %v603 = vmax.f32 %v521, %v599
  %vm604 = vcmask 121856
  %605 = vst.msk [vmem:[%s9] sm:$0xff] %vm604, %v602
  %606 = vst.msk [vmem:[%s9 + $0x8] sm:$0xff] %vm604, %v603
  %s607 = scalar_lea.vmem %s0, 2
  %v608 = vld [vmem:[%s607] sm:$0x3]
  %609 = vst.msk [vmem:[#allocation2] sm:$0x3] %vm65, %v608
  %611 = vrot.lane.b32.xlu0 %v608, 127
  %v612 = vpop.permute.xlu0 %611
  %614 = vst.msk [vmem:[#allocation2 + $0x2] sm:$0x3] %vm65, %v612
  %615 = vrot.lane.b32.xlu0 %v608, 126
  %v616 = vpop.permute.xlu0 %615
  %618 = vst.msk [vmem:[#allocation2 + $0x4] sm:$0x3] %vm65, %v616
  %619 = vrot.lane.b32.xlu0 %v608, 125
  %v620 = vpop.permute.xlu0 %619
  %622 = vst.msk [vmem:[#allocation2 + $0x6] sm:$0x3] %vm65, %v620
  %623 = vrot.lane.b32.xlu0 %v608, 124
  %v624 = vpop.permute.xlu0 %623
  %626 = vst.msk [vmem:[#allocation2 + $0x8] sm:$0x3] %vm65, %v624
  %v627 = vld [vmem:[#allocation2] sm:$0xff]
  %v628 = vld [vmem:[#allocation2 + $0x8] sm:$0x3]
  %v630 = vsel %vm95, %v628, 0
  %632 = vmatprep.subr.mxu0 0.0
  %633 = vmatpush1.msra.mxu0 %v627
  %634 = vmatprep.subr.mxu0 0.0
  %635 = vmatpush1.msra.mxu0 %v630
  %636 = vmatprep.subr.mxu0 0.0
  %637 = vmatpush1.msra.mxu0 0.0
  %638 = vmatprep.subr.mxu0 0.0
  %639 = vmatpush1.msra.mxu0 0.0
  %640 = vmatprep.subr.mxu0 0.0
  %641 = vmatpush1.msra.mxu0 0.0
  %642 = vmatprep.subr.mxu0 0.0
  %643 = vmatpush1.msra.mxu0 0.0
  %644 = vmatprep.subr.mxu0 0.0
  %645 = vmatpush1.msra.mxu0 0.0
  %646 = vmatprep.subr.mxu0 0.0
  %647 = vmatpush1.msra.mxu0 0.0
  %648 = vmatprep.subr.mxu0 0.0
  %649 = vmatpush1.msra.mxu0 0.0
  %650 = vmatprep.subr.mxu0 0.0
  %651 = vmatpush1.msra.mxu0 0.0
  %652 = vmatprep.subr.mxu0 0.0
  %653 = vmatpush1.msra.mxu0 0.0
  %654 = vmatprep.subr.mxu0 0.0
  %655 = vmatpush1.msra.mxu0 0.0
  %656 = vmatprep.subr.mxu0 0.0
  %657 = vmatpush1.msra.mxu0 0.0
  %658 = vmatprep.subr.mxu0 0.0
  %659 = vmatpush1.msra.mxu0 0.0
  %660 = vmatprep.subr.mxu0 0.0
  %661 = vmatpush1.msra.mxu0 0.0
  %662 = vmatprep.subr.mxu0 0.0
  %663 = vmatpush1.msra.mxu0 0.0
  %664 = vmatprep.subr.mxu0 0.0
  %665 = vmatpush1.msra.mxu0 0.0
  %666 = vmatprep.subr.mxu0 0.0
  %667 = vmatpush1.msra.mxu0 0.0
  %668 = vmatprep.subr.mxu0 0.0
  %669 = vmatpush1.msra.mxu0 0.0
  %670 = vmatprep.subr.mxu0 0.0
  %671 = vmatpush1.msra.mxu0 0.0
  %672 = vmatprep.subr.mxu0 0.0
  %673 = vmatpush1.msra.mxu0 0.0
  %674 = vmatprep.subr.mxu0 0.0
  %675 = vmatpush1.msra.mxu0 0.0
  %676 = vmatprep.subr.mxu0 0.0
  %677 = vmatpush1.msra.mxu0 0.0
  %678 = vmatprep.subr.mxu0 0.0
  %679 = vmatpush1.msra.mxu0 0.0
  %680 = vmatprep.subr.mxu0 0.0
  %681 = vmatpush1.msra.mxu0 0.0
  %682 = vmatprep.subr.mxu0 0.0
  %683 = vmatpush1.msra.mxu0 0.0
  %684 = vmatprep.subr.mxu0 0.0
  %685 = vmatpush1.msra.mxu0 0.0
  %686 = vmatprep.subr.mxu0 0.0
  %687 = vmatpush1.msra.mxu0 0.0
  %688 = vmatprep.subr.mxu0 0.0
  %689 = vmatpush1.msra.mxu0 0.0
  %690 = vmatprep.subr.mxu0 0.0
  %691 = vmatpush1.msra.mxu0 0.0
  %692 = vmatprep.subr.mxu0 0.0
  %693 = vmatpush1.msra.mxu0 0.0
  %694 = vmatprep.subr.mxu0 0.0
  %695 = vmatpush1.msra.mxu0 0.0
  %696 = vmatprep.mubr.f32.mxu0 0.0
  %697 = vmatmul.mubr.f32.gmra.mrb[0].mxu0 %v93
  %v698 = vpop.f32.mrb[0].mxu0
  %v699 = vadd.f32 %v89, %v698
  %v700 = vpop.f32.mrb[0].mxu0
  %701 = vdwg.mxu0
  %v702 = vmax.f32 %v699, 0.0
  %v704 = vsel %vm170, %v702, 0
  %706 = vmatprep.subr.mxu0 0.0
  %707 = vmatpush1.msra.mxu0 %v34
  %708 = vmatprep.subr.mxu0 0.0
  %709 = vmatpush1.msra.mxu0 %v35
  %710 = vmatprep.subr.mxu0 0.0
  %711 = vmatpush1.msra.mxu0 %v36
  %712 = vmatprep.subr.mxu0 0.0
  %713 = vmatpush1.msra.mxu0 %v37
  %714 = vmatprep.subr.mxu0 0.0
  %715 = vmatpush1.msra.mxu0 %v38
  %716 = vmatprep.subr.mxu0 0.0
  %717 = vmatpush1.msra.mxu0 %v39
  %718 = vmatprep.subr.mxu0 0.0
  %719 = vmatpush1.msra.mxu0 %v40
  %720 = vmatprep.subr.mxu0 0.0
  %721 = vmatpush1.msra.mxu0 %v41
  %722 = vmatprep.subr.mxu0 0.0
  %723 = vmatpush1.msra.mxu0 %v176
  %724 = vmatprep.subr.mxu0 0.0
  %725 = vmatpush1.msra.mxu0 0.0
  %726 = vmatprep.subr.mxu0 0.0
  %727 = vmatpush1.msra.mxu0 0.0
  %728 = vmatprep.subr.mxu0 0.0
  %729 = vmatpush1.msra.mxu0 0.0
  %730 = vmatprep.subr.mxu0 0.0
  %731 = vmatpush1.msra.mxu0 0.0
  %732 = vmatprep.subr.mxu0 0.0
  %733 = vmatpush1.msra.mxu0 0.0
  %734 = vmatprep.subr.mxu0 0.0
  %735 = vmatpush1.msra.mxu0 0.0
  %736 = vmatprep.subr.mxu0 0.0
  %737 = vmatpush1.msra.mxu0 0.0
  %738 = vmatprep.subr.mxu0 0.0
  %739 = vmatpush1.msra.mxu0 0.0
  %740 = vmatprep.subr.mxu0 0.0
  %741 = vmatpush1.msra.mxu0 0.0
  %742 = vmatprep.subr.mxu0 0.0
  %743 = vmatpush1.msra.mxu0 0.0
  %744 = vmatprep.subr.mxu0 0.0
  %745 = vmatpush1.msra.mxu0 0.0
  %746 = vmatprep.subr.mxu0 0.0
  %747 = vmatpush1.msra.mxu0 0.0
  %748 = vmatprep.subr.mxu0 0.0
  %749 = vmatpush1.msra.mxu0 0.0
  %750 = vmatprep.subr.mxu0 0.0
  %751 = vmatpush1.msra.mxu0 0.0
  %752 = vmatprep.subr.mxu0 0.0
  %753 = vmatpush1.msra.mxu0 0.0
  %754 = vmatprep.subr.mxu0 0.0
  %755 = vmatpush1.msra.mxu0 0.0
  %756 = vmatprep.subr.mxu0 0.0
  %757 = vmatpush1.msra.mxu0 0.0
  %758 = vmatprep.subr.mxu0 0.0
  %759 = vmatpush1.msra.mxu0 0.0
  %760 = vmatprep.subr.mxu0 0.0
  %761 = vmatpush1.msra.mxu0 0.0
  %762 = vmatprep.subr.mxu0 0.0
  %763 = vmatpush1.msra.mxu0 0.0
  %764 = vmatprep.subr.mxu0 0.0
  %765 = vmatpush1.msra.mxu0 0.0
  %766 = vmatprep.subr.mxu0 0.0
  %767 = vmatpush1.msra.mxu0 0.0
  %768 = vmatprep.subr.mxu0 0.0
  %769 = vmatpush1.msra.mxu0 0.0
  %770 = vmatprep.mubr.f32.mxu0 0.0
  %771 = vmatmul.mubr.f32.gmra.mrb[0].mxu0 %v704
  %v772 = vpop.f32.mrb[0].mxu0
  %v773 = vadd.f32 0.0, %v772
  %v774 = vpop.f32.mrb[0].mxu0
  %775 = vdwg.mxu0
  %776 = vmatprep.subr.mxu0 0.0
  %777 = vmatpush1.msra.mxu0 %v43
  %778 = vmatprep.subr.mxu0 0.0
  %779 = vmatpush1.msra.mxu0 %v44
  %780 = vmatprep.subr.mxu0 0.0
  %781 = vmatpush1.msra.mxu0 %v45
  %782 = vmatprep.subr.mxu0 0.0
  %783 = vmatpush1.msra.mxu0 %v46
  %784 = vmatprep.subr.mxu0 0.0
  %785 = vmatpush1.msra.mxu0 %v47
  %786 = vmatprep.subr.mxu0 0.0
  %787 = vmatpush1.msra.mxu0 %v48
  %788 = vmatprep.subr.mxu0 0.0
  %789 = vmatpush1.msra.mxu0 %v49
  %790 = vmatprep.subr.mxu0 0.0
  %791 = vmatpush1.msra.mxu0 %v50
  %792 = vmatprep.subr.mxu0 0.0
  %793 = vmatpush1.msra.mxu0 %v249
  %794 = vmatprep.subr.mxu0 0.0
  %795 = vmatpush1.msra.mxu0 0.0
  %796 = vmatprep.subr.mxu0 0.0
  %797 = vmatpush1.msra.mxu0 0.0
  %798 = vmatprep.subr.mxu0 0.0
  %799 = vmatpush1.msra.mxu0 0.0
  %800 = vmatprep.subr.mxu0 0.0
  %801 = vmatpush1.msra.mxu0 0.0
  %802 = vmatprep.subr.mxu0 0.0
  %803 = vmatpush1.msra.mxu0 0.0
  %804 = vmatprep.subr.mxu0 0.0
  %805 = vmatpush1.msra.mxu0 0.0
  %806 = vmatprep.subr.mxu0 0.0
  %807 = vmatpush1.msra.mxu0 0.0
  %808 = vmatprep.subr.mxu0 0.0
  %809 = vmatpush1.msra.mxu0 0.0
  %810 = vmatprep.subr.mxu0 0.0
  %811 = vmatpush1.msra.mxu0 0.0
  %812 = vmatprep.subr.mxu0 0.0
  %813 = vmatpush1.msra.mxu0 0.0
  %814 = vmatprep.subr.mxu0 0.0
  %815 = vmatpush1.msra.mxu0 0.0
  %816 = vmatprep.subr.mxu0 0.0
  %817 = vmatpush1.msra.mxu0 0.0
  %818 = vmatprep.subr.mxu0 0.0
  %819 = vmatpush1.msra.mxu0 0.0
  %820 = vmatprep.subr.mxu0 0.0
  %821 = vmatpush1.msra.mxu0 0.0
  %822 = vmatprep.subr.mxu0 0.0
  %823 = vmatpush1.msra.mxu0 0.0
  %824 = vmatprep.subr.mxu0 0.0
  %825 = vmatpush1.msra.mxu0 0.0
  %826 = vmatprep.subr.mxu0 0.0
  %827 = vmatpush1.msra.mxu0 0.0
  %828 = vmatprep.subr.mxu0 0.0
  %829 = vmatpush1.msra.mxu0 0.0
  %830 = vmatprep.subr.mxu0 0.0
  %831 = vmatpush1.msra.mxu0 0.0
  %832 = vmatprep.subr.mxu0 0.0
  %833 = vmatpush1.msra.mxu0 0.0
  %834 = vmatprep.subr.mxu0 0.0
  %835 = vmatpush1.msra.mxu0 0.0
  %836 = vmatprep.subr.mxu0 0.0
  %837 = vmatpush1.msra.mxu0 0.0
  %838 = vmatprep.subr.mxu0 0.0
  %839 = vmatpush1.msra.mxu0 0.0
  %840 = vmatprep.mubr.f32.mxu0 0.0
  %841 = vmatmul.mubr.f32.gmra.mrb[0].mxu0 %v704
  %v842 = vpop.f32.mrb[0].mxu0
  %v843 = vadd.f32 0.0, %v842
  %v844 = vpop.f32.mrb[0].mxu0
  %845 = vdwg.mxu0
  %v846 = vmax.f32 %v773, %v843
  %847 = vst.msk [vmem:[#allocation3] sm:$0xff] %vm322, %v846
  %849 = vrot.lane.b32.xlu0 %v846, 127
  %v850 = vpop.permute.xlu0 %849
  %852 = vst.msk [vmem:[#allocation3 + $0x8] sm:$0xff] %vm322, %v850
  %853 = vrot.lane.b32.xlu0 %v846, 126
  %v854 = vpop.permute.xlu0 %853
  %856 = vst.msk [vmem:[#allocation3 + $0x10] sm:$0xff] %vm322, %v854
  %857 = vrot.lane.b32.xlu0 %v846, 125
  %v858 = vpop.permute.xlu0 %857
  %860 = vst.msk [vmem:[#allocation3 + $0x18] sm:$0xff] %vm322, %v858
  %861 = vrot.lane.b32.xlu0 %v846, 124
  %v862 = vpop.permute.xlu0 %861
  %864 = vst.msk [vmem:[#allocation3 + $0x20] sm:$0xff] %vm322, %v862
  %v865 = vld [vmem:[#allocation3] sm:$0xff]
  %v866 = vld [vmem:[#allocation3 + $0x8] sm:$0xff]
  %v867 = vld [vmem:[#allocation3 + $0x10] sm:$0xff]
  %v868 = vld [vmem:[#allocation3 + $0x18] sm:$0xff]
  %v869 = vld [vmem:[#allocation3 + $0x20] sm:$0xff]
  %870 = vmatprep.subr.mxu0 0.0
  %871 = vmatpush1.msra.mxu0 %v865
  %872 = vmatprep.subr.mxu0 0.0
  %873 = vmatpush1.msra.mxu0 %v866
  %874 = vmatprep.subr.mxu0 0.0
  %875 = vmatpush1.msra.mxu0 %v867
  %876 = vmatprep.subr.mxu0 0.0
  %877 = vmatpush1.msra.mxu0 %v868
  %878 = vmatprep.subr.mxu0 0.0
  %879 = vmatpush1.msra.mxu0 %v869
  %880 = vmatprep.subr.mxu0 0.0
  %881 = vmatpush1.msra.mxu0 0.0
  %882 = vmatprep.subr.mxu0 0.0
  %883 = vmatpush1.msra.mxu0 0.0
  %884 = vmatprep.subr.mxu0 0.0
  %885 = vmatpush1.msra.mxu0 0.0
  %886 = vmatprep.subr.mxu0 0.0
  %887 = vmatpush1.msra.mxu0 0.0
  %888 = vmatprep.subr.mxu0 0.0
  %889 = vmatpush1.msra.mxu0 0.0
  %890 = vmatprep.subr.mxu0 0.0
  %891 = vmatpush1.msra.mxu0 0.0
  %892 = vmatprep.subr.mxu0 0.0
  %893 = vmatpush1.msra.mxu0 0.0
  %894 = vmatprep.subr.mxu0 0.0
  %895 = vmatpush1.msra.mxu0 0.0
  %896 = vmatprep.subr.mxu0 0.0
  %897 = vmatpush1.msra.mxu0 0.0
  %898 = vmatprep.subr.mxu0 0.0
  %899 = vmatpush1.msra.mxu0 0.0
  %900 = vmatprep.subr.mxu0 0.0
  %901 = vmatpush1.msra.mxu0 0.0
  %902 = vmatprep.subr.mxu0 0.0
  %903 = vmatpush1.msra.mxu0 0.0
  %904 = vmatprep.subr.mxu0 0.0
  %905 = vmatpush1.msra.mxu0 0.0
  %906 = vmatprep.subr.mxu0 0.0
  %907 = vmatpush1.msra.mxu0 0.0
  %908 = vmatprep.subr.mxu0 0.0
  %909 = vmatpush1.msra.mxu0 0.0
  %910 = vmatprep.subr.mxu0 0.0
  %911 = vmatpush1.msra.mxu0 0.0
  %912 = vmatprep.subr.mxu0 0.0
  %913 = vmatpush1.msra.mxu0 0.0
  %914 = vmatprep.subr.mxu0 0.0
  %915 = vmatpush1.msra.mxu0 0.0
  %916 = vmatprep.subr.mxu0 0.0
  %917 = vmatpush1.msra.mxu0 0.0
  %918 = vmatprep.subr.mxu0 0.0
  %919 = vmatpush1.msra.mxu0 0.0
  %920 = vmatprep.subr.mxu0 0.0
  %921 = vmatpush1.msra.mxu0 0.0
  %922 = vmatprep.subr.mxu0 0.0
  %923 = vmatpush1.msra.mxu0 0.0
  %924 = vmatprep.subr.mxu0 0.0
  %925 = vmatpush1.msra.mxu0 0.0
  %926 = vmatprep.subr.mxu0 0.0
  %927 = vmatpush1.msra.mxu0 0.0
  %928 = vmatprep.subr.mxu0 0.0
  %929 = vmatpush1.msra.mxu0 0.0
  %930 = vmatprep.subr.mxu0 0.0
  %931 = vmatpush1.msra.mxu0 0.0
  %932 = vmatprep.subr.mxu0 0.0
  %933 = vmatpush1.msra.mxu0 0.0
  %934 = vmatprep.mubr.f32.mxu0 0.0
  %935 = vmatmul.mubr.f32.gmra.mrb[0].mxu0 %v358
  %v936 = vpop.f32.mrb[0].mxu0
  %v937 = vadd.f32 %v349, %v936
  %v938 = vpop.f32.mrb[0].mxu0
  %939 = vmatprep.mubr.f32.mxu0 0.0
  %940 = vmatmul.mubr.f32.gmra.mrb[0].mxu0 %v361
  %v941 = vpop.f32.mrb[0].mxu0
  %v942 = vadd.f32 %v354, %v941
  %v943 = vpop.f32.mrb[0].mxu0
  %944 = vdwg.mxu0
  %v945 = vmax.f32 %v937, 0.0
  %v946 = vmax.f32 %v942, 0.0
  %v948 = vsel %vm322, %v945, 0
  %v951 = vsel %vm322, %v946, 0
  %953 = vmatprep.subr.mxu0 0.0
  %954 = vmatpush1.msra.mxu0 %v56
  %955 = vmatprep.subr.mxu0 0.0
  %956 = vmatpush1.msra.mxu0 %v57
  %957 = vmatprep.subr.mxu0 0.0
  %958 = vmatpush1.msra.mxu0 %v58
  %959 = vmatprep.subr.mxu0 0.0
  %960 = vmatpush1.msra.mxu0 %v447
  %961 = vmatprep.subr.mxu0 0.0
  %962 = vmatpush1.msra.mxu0 0.0
  %963 = vmatprep.subr.mxu0 0.0
  %964 = vmatpush1.msra.mxu0 0.0
  %965 = vmatprep.subr.mxu0 0.0
  %966 = vmatpush1.msra.mxu0 0.0
  %967 = vmatprep.subr.mxu0 0.0
  %968 = vmatpush1.msra.mxu0 0.0
  %969 = vmatprep.subr.mxu0 0.0
  %970 = vmatpush1.msra.mxu0 0.0
  %971 = vmatprep.subr.mxu0 0.0
  %972 = vmatpush1.msra.mxu0 0.0
  %973 = vmatprep.subr.mxu0 0.0
  %974 = vmatpush1.msra.mxu0 0.0
  %975 = vmatprep.subr.mxu0 0.0
  %976 = vmatpush1.msra.mxu0 0.0
  %977 = vmatprep.subr.mxu0 0.0
  %978 = vmatpush1.msra.mxu0 0.0
  %979 = vmatprep.subr.mxu0 0.0
  %980 = vmatpush1.msra.mxu0 0.0
  %981 = vmatprep.subr.mxu0 0.0
  %982 = vmatpush1.msra.mxu0 0.0
  %983 = vmatprep.subr.mxu0 0.0
  %984 = vmatpush1.msra.mxu0 0.0
  %985 = vmatprep.subr.mxu0 0.0
  %986 = vmatpush1.msra.mxu0 0.0
  %987 = vmatprep.subr.mxu0 0.0
  %988 = vmatpush1.msra.mxu0 0.0
  %989 = vmatprep.subr.mxu0 0.0
  %990 = vmatpush1.msra.mxu0 0.0
  %991 = vmatprep.subr.mxu0 0.0
  %992 = vmatpush1.msra.mxu0 0.0
  %993 = vmatprep.subr.mxu0 0.0
  %994 = vmatpush1.msra.mxu0 0.0
  %995 = vmatprep.subr.mxu0 0.0
  %996 = vmatpush1.msra.mxu0 0.0
  %997 = vmatprep.subr.mxu0 0.0
  %998 = vmatpush1.msra.mxu0 0.0
  %999 = vmatprep.subr.mxu0 0.0
  %1000 = vmatpush1.msra.mxu0 0.0
  %1001 = vmatprep.subr.mxu0 0.0
  %1002 = vmatpush1.msra.mxu0 0.0
  %1003 = vmatprep.subr.mxu0 0.0
  %1004 = vmatpush1.msra.mxu0 0.0
  %1005 = vmatprep.subr.mxu0 0.0
  %1006 = vmatpush1.msra.mxu0 0.0
  %1007 = vmatprep.subr.mxu0 0.0
  %1008 = vmatpush1.msra.mxu0 0.0
  %1009 = vmatprep.subr.mxu0 0.0
  %1010 = vmatpush1.msra.mxu0 0.0
  %1011 = vmatprep.subr.mxu0 0.0
  %1012 = vmatpush1.msra.mxu0 0.0
  %1013 = vmatprep.subr.mxu0 0.0
  %1014 = vmatpush1.msra.mxu0 0.0
  %1015 = vmatprep.subr.mxu0 0.0
  %1016 = vmatpush1.msra.mxu0 0.0
  %1017 = vmatprep.mubr.f32.mxu0 0.0
  %1018 = vmatmul.mubr.f32.gmra.mrb[0].mxu0 %v948
  %v1019 = vpop.f32.mrb[0].mxu0
  %v1020 = vadd.f32 0.0, %v1019
  %v1021 = vpop.f32.mrb[0].mxu0
  %1022 = vmatprep.mubr.f32.mxu0 0.0
  %1023 = vmatmul.mubr.f32.gmra.mrb[0].mxu0 %v951
  %v1024 = vpop.f32.mrb[0].mxu0
  %v1025 = vadd.f32 0.0, %v1024
  %v1026 = vpop.f32.mrb[0].mxu0
  %1027 = vdwg.mxu0
  %1028 = vmatprep.subr.mxu0 0.0
  %1029 = vmatpush1.msra.mxu0 %v60
  %1030 = vmatprep.subr.mxu0 0.0
  %1031 = vmatpush1.msra.mxu0 %v61
  %1032 = vmatprep.subr.mxu0 0.0
  %1033 = vmatpush1.msra.mxu0 %v62
  %1034 = vmatprep.subr.mxu0 0.0
  %1035 = vmatpush1.msra.mxu0 %v525
  %1036 = vmatprep.subr.mxu0 0.0
  %1037 = vmatpush1.msra.mxu0 0.0
  %1038 = vmatprep.subr.mxu0 0.0
  %1039 = vmatpush1.msra.mxu0 0.0
  %1040 = vmatprep.subr.mxu0 0.0
  %1041 = vmatpush1.msra.mxu0 0.0
  %1042 = vmatprep.subr.mxu0 0.0
  %1043 = vmatpush1.msra.mxu0 0.0
  %1044 = vmatprep.subr.mxu0 0.0
  %1045 = vmatpush1.msra.mxu0 0.0
  %1046 = vmatprep.subr.mxu0 0.0
  %1047 = vmatpush1.msra.mxu0 0.0
  %1048 = vmatprep.subr.mxu0 0.0
  %1049 = vmatpush1.msra.mxu0 0.0
  %1050 = vmatprep.subr.mxu0 0.0
  %1051 = vmatpush1.msra.mxu0 0.0
  %1052 = vmatprep.subr.mxu0 0.0
  %1053 = vmatpush1.msra.mxu0 0.0
  %1054 = vmatprep.subr.mxu0 0.0
  %1055 = vmatpush1.msra.mxu0 0.0
  %1056 = vmatprep.subr.mxu0 0.0
  %1057 = vmatpush1.msra.mxu0 0.0
  %1058 = vmatprep.subr.mxu0 0.0
  %1059 = vmatpush1.msra.mxu0 0.0
  %1060 = vmatprep.subr.mxu0 0.0
  %1061 = vmatpush1.msra.mxu0 0.0
  %1062 = vmatprep.subr.mxu0 0.0
  %1063 = vmatpush1.msra.mxu0 0.0
  %1064 = vmatprep.subr.mxu0 0.0
  %1065 = vmatpush1.msra.mxu0 0.0
  %1066 = vmatprep.subr.mxu0 0.0
  %1067 = vmatpush1.msra.mxu0 0.0
  %1068 = vmatprep.subr.mxu0 0.0
  %1069 = vmatpush1.msra.mxu0 0.0
  %1070 = vmatprep.subr.mxu0 0.0
  %1071 = vmatpush1.msra.mxu0 0.0
  %1072 = vmatprep.subr.mxu0 0.0
  %1073 = vmatpush1.msra.mxu0 0.0
  %1074 = vmatprep.subr.mxu0 0.0
  %1075 = vmatpush1.msra.mxu0 0.0
  %1076 = vmatprep.subr.mxu0 0.0
  %1077 = vmatpush1.msra.mxu0 0.0
  %1078 = vmatprep.subr.mxu0 0.0
  %1079 = vmatpush1.msra.mxu0 0.0
  %1080 = vmatprep.subr.mxu0 0.0
  %1081 = vmatpush1.msra.mxu0 0.0
  %1082 = vmatprep.subr.mxu0 0.0
  %1083 = vmatpush1.msra.mxu0 0.0
  %1084 = vmatprep.subr.mxu0 0.0
  %1085 = vmatpush1.msra.mxu0 0.0
  %1086 = vmatprep.subr.mxu0 0.0
  %1087 = vmatpush1.msra.mxu0 0.0
  %1088 = vmatprep.subr.mxu0 0.0
  %1089 = vmatpush1.msra.mxu0 0.0
  %1090 = vmatprep.subr.mxu0 0.0
  %1091 = vmatpush1.msra.mxu0 0.0
  %1092 = vmatprep.mubr.f32.mxu0 0.0
  %1093 = vmatmul.mubr.f32.gmra.mrb[0].mxu0 %v948
  %v1094 = vpop.f32.mrb[0].mxu0
  %v1095 = vadd.f32 0.0, %v1094
  %v1096 = vpop.f32.mrb[0].mxu0
  %1097 = vmatprep.mubr.f32.mxu0 0.0
  %1098 = vmatmul.mubr.f32.gmra.mrb[0].mxu0 %v951
  %v1099 = vpop.f32.mrb[0].mxu0
  %v1100 = vadd.f32 0.0, %v1099
  %v1101 = vpop.f32.mrb[0].mxu0
  %1102 = vdwg.mxu0
  %v1103 = vmax.f32 %v1020, %v1095
  %v1104 = vmax.f32 %v1025, %v1100
  %s1105 = scalar_lea.vmem %s9, 16
  %1106 = vst.msk [vmem:[%s1105] sm:$0xff] %vm604, %v1103
  %1107 = vst.msk [vmem:[%s1105 + $0x8] sm:$0xff] %vm604, %v1104
  // Predicated region
  $region38: #{encoder_forward.1} parent=0 // pred_check
    _
  $region39: #{encoder_forward.1} parent=0 // pred_check_branch
    %1109 = sbr.rel (0) target = $region41
  $region40: #{encoder_forward.1} parent=0 // pred_region
    _
  $region41: #{encoder_forward.1} parent=0 // pred_fallthru
    _
  // Predicated region
  $region42: #{encoder_forward.1} parent=0 // pred_check
    _
  $region43: #{encoder_forward.1} parent=0 // pred_check_branch
    %1111 = sbr.rel (0) target = $region45
  $region44: #{encoder_forward.1} parent=0 // pred_region
    _
  $region45: #{encoder_forward.1} parent=0 // pred_fallthru
    _

</llo_original>
